<compile_context>
chip_gen: v6e
topology: v6e:2x2x1
jax: 0.10.0
libtpu: 0.0.40
codegen_flags: <defaults>
</compile_context>

<pallas_src>
import functools

import jax
import jax.numpy as jnp
from jax.experimental import pallas as pl
from jax.experimental.pallas import tpu as pltpu


def _critic_kernel(s_ref, a_ref, w1s_ref, w1a_ref, b1_ref,
                   w2_ref, b2_ref, w3_ref, b3_ref, o_ref):
    # fc1: fused concat = dot(state, w1_s) + dot(action, w1_a); bf16 MXU, f32 acc.
    s = s_ref[...].astype(jnp.bfloat16)
    a = a_ref[...].astype(jnp.bfloat16)
    h1 = jnp.dot(s, w1s_ref[...], preferred_element_type=jnp.float32)
    h1 = h1 + jnp.dot(a, w1a_ref[...], preferred_element_type=jnp.float32)
    h1 = jnp.maximum(h1 + b1_ref[...], 0.0)                 # f32 VPU

    # fc2: bf16 MXU, f32 acc.
    h2 = jnp.dot(h1.astype(jnp.bfloat16), w2_ref[...],
                 preferred_element_type=jnp.float32)
    h2 = jnp.maximum(h2 + b2_ref[...], 0.0)                 # f32 VPU

    # fc3 (256 -> 1): VPU multiply + lane reduction (skip the N=1 MXU pass).
    o_ref[...] = jnp.sum(h2 * w3_ref[...], axis=-1, keepdims=True) + b3_ref[...]


@functools.partial(jax.jit, static_argnames=("tile_b",))
def critic_forward(state, action, params, tile_b=256):
    """Pallas implementation of Critic.forward(state, action) -> (B, 1) f32."""
    w1, b1, w2, b2, w3, b3 = params
    B, S = state.shape
    _, A = action.shape
    hidden = w1.shape[1]

    # Split fc1 weights so the concat never materializes in HBM.
    w1_s = w1[:S].astype(jnp.bfloat16)          # (S, hidden)
    w1_a = w1[S:].astype(jnp.bfloat16)          # (A, hidden)
    w2_bf = w2.astype(jnp.bfloat16)             # (hidden, hidden)
    w3_row = w3.reshape(1, hidden)              # (1, hidden) f32 for the VPU path
    b3_2d = b3.reshape(1, 1)

    # Effective batch tile: multiple of 8, at most tile_b; pad B up to a multiple.
    eff_tile = min(tile_b, max(8, -(-B // 8) * 8))
    padded = -(-B // eff_tile) * eff_tile
    if padded != B:
        pad = padded - B
        state = jnp.pad(state, ((0, pad), (0, 0)))
        action = jnp.pad(action, ((0, pad), (0, 0)))
    grid = (padded // eff_tile,)
    # NOTE: for very large B the grid has >=2 "parallel" steps, so v7x's two
    # TensorCores both get work; weights (<0.2 MiB in bf16) + a 256-row tile
    # stay far under the scoped-VMEM limit on every generation.

    in_specs = [
        pl.BlockSpec((eff_tile, S), lambda i: (i, 0)),       # state tile
        pl.BlockSpec((eff_tile, A), lambda i: (i, 0)),       # action tile
        pl.BlockSpec((S, hidden), lambda i: (0, 0)),         # w1_state (bf16)
        pl.BlockSpec((A, hidden), lambda i: (0, 0)),         # w1_action (bf16)
        pl.BlockSpec((1, hidden), lambda i: (0, 0)),         # b1 (f32)
        pl.BlockSpec((hidden, hidden), lambda i: (0, 0)),    # w2 (bf16)
        pl.BlockSpec((1, hidden), lambda i: (0, 0)),         # b2 (f32)
        pl.BlockSpec((1, hidden), lambda i: (0, 0)),         # w3 row (f32)
        pl.BlockSpec((1, 1), lambda i: (0, 0)),              # b3 (f32)
    ]
    out_spec = pl.BlockSpec((eff_tile, 1), lambda i: (i, 0))

    out = pl.pallas_call(
        _critic_kernel,
        out_shape=jax.ShapeDtypeStruct((padded, 1), jnp.float32),
        grid_spec=pltpu.PrefetchScalarGridSpec(
            num_scalar_prefetch=0,
            grid=grid,
            in_specs=in_specs,
            out_specs=out_spec,
        ),
        compiler_params=pltpu.CompilerParams(
            dimension_semantics=("parallel",),
        ),
    )(state, action, w1_s, w1_a, b1, w2_bf, b2, w3_row, b3_2d)

    return out[:B]


def init_critic_params(key, state_size, action_size, hidden=256):
    """Mimics nn.Linear default init U(-1/sqrt(fan_in), 1/sqrt(fan_in)).

    Weights stored as (in_features, out_features); biases as (1, out_features).
    """
    in_dim = state_size + action_size
    keys = jax.random.split(key, 6)

    def lin(kw, kb, fan_in, fan_out):
        bound = 1.0 / jnp.sqrt(float(fan_in))
        w = jax.random.uniform(kw, (fan_in, fan_out), jnp.float32, -bound, bound)
        b = jax.random.uniform(kb, (1, fan_out), jnp.float32, -bound, bound)
        return w, b

    w1, b1 = lin(keys[0], keys[1], in_dim, hidden)
    w2, b2 = lin(keys[2], keys[3], hidden, hidden)
    w3, b3 = lin(keys[4], keys[5], hidden, 1)
    return (w1, b1, w2, b2, w3, b3)


def critic_reference(state, action, params):
    """Pure-JAX f32 reference of the PyTorch forward."""
    w1, b1, w2, b2, w3, b3 = params
    x = jnp.concatenate([state, action], axis=1)
    x = jnp.maximum(x @ w1 + b1, 0.0)
    x = jnp.maximum(x @ w2 + b2, 0.0)
    return x @ w3 + b3


if __name__ == "__main__":
    STATE_SIZE = 16
    ACTION_SIZE = 4
    BATCH = 8

    key = jax.random.PRNGKey(0)
    k_params, k_state, k_action = jax.random.split(key, 3)

    params = init_critic_params(k_params, STATE_SIZE, ACTION_SIZE)
    state = jax.random.normal(k_state, (BATCH, STATE_SIZE), jnp.float32)
    action = jax.random.normal(k_action, (BATCH, ACTION_SIZE), jnp.float32)

    out = critic_forward(state, action, params)
    out = jax.block_until_ready(out)

    ref = critic_reference(state, action, params)
    assert out.shape == (BATCH, 1), out.shape
    # bf16 matmul operands (f32 accumulation) -> relaxed tolerance vs f32 reference.
    assert jnp.allclose(out, ref, atol=3e-2, rtol=3e-2), (out, ref)

    print("KERNEL_OK")
</pallas_src>

<mosaic_0001>
module attributes {stable_mosaic.version = 11 : i64} {
  func.func @_critic_kernel(%arg0: i32, %arg1: memref<8x16xf32, #tpu.memory_space<vmem>>, %arg2: memref<8x4xf32, #tpu.memory_space<vmem>>, %arg3: memref<16x256xbf16, #tpu.memory_space<vmem>>, %arg4: memref<4x256xbf16, #tpu.memory_space<vmem>>, %arg5: memref<1x256xf32, #tpu.memory_space<vmem>>, %arg6: memref<256x256xbf16, #tpu.memory_space<vmem>>, %arg7: memref<1x256xf32, #tpu.memory_space<vmem>>, %arg8: memref<1x256xf32, #tpu.memory_space<vmem>>, %arg9: memref<1x1xf32, #tpu.memory_space<vmem>>, %arg10: memref<8x1xf32, #tpu.memory_space<vmem>>) attributes {dimension_semantics = [#tpu.dimension_semantics<parallel>], iteration_bounds = array<i64: 1>, scalar_prefetch = 0 : i64, scratch_operands = 0 : i64, tpu.core_type = #tpu.core_type<tc>, window_params = [{transform_indices = @transform_0, window_bounds = array<i64: 8, 16>}, {transform_indices = @transform_1, window_bounds = array<i64: 8, 4>}, {pipeline_mode = #tpu.pipeline_mode<synchronous>, transform_indices = @transform_2, window_bounds = array<i64: 16, 256>}, {pipeline_mode = #tpu.pipeline_mode<synchronous>, transform_indices = @transform_3, window_bounds = array<i64: 4, 256>}, {pipeline_mode = #tpu.pipeline_mode<synchronous>, transform_indices = @transform_4, window_bounds = array<i64: 1, 256>}, {pipeline_mode = #tpu.pipeline_mode<synchronous>, transform_indices = @transform_5, window_bounds = array<i64: 256, 256>}, {pipeline_mode = #tpu.pipeline_mode<synchronous>, transform_indices = @transform_6, window_bounds = array<i64: 1, 256>}, {pipeline_mode = #tpu.pipeline_mode<synchronous>, transform_indices = @transform_7, window_bounds = array<i64: 1, 256>}, {pipeline_mode = #tpu.pipeline_mode<synchronous>, transform_indices = @transform_8, window_bounds = array<i64: 1, 1>}, {transform_indices = @transform_9, window_bounds = array<i64: 8, 1>}]} {
    %c0 = arith.constant 0 : index
    %c0_0 = arith.constant 0 : index
    %0 = vector.load %arg1[%c0, %c0_0] : memref<8x16xf32, #tpu.memory_space<vmem>>, vector<8x16xf32>
    %1 = arith.truncf %0 : vector<8x16xf32> to vector<8x16xbf16>
    %c0_1 = arith.constant 0 : index
    %c0_2 = arith.constant 0 : index
    %2 = vector.load %arg2[%c0_1, %c0_2] : memref<8x4xf32, #tpu.memory_space<vmem>>, vector<8x4xf32>
    %3 = arith.truncf %2 : vector<8x4xf32> to vector<8x4xbf16>
    %c0_3 = arith.constant 0 : index
    %c0_4 = arith.constant 0 : index
    %4 = vector.load %arg3[%c0_3, %c0_4] : memref<16x256xbf16, #tpu.memory_space<vmem>>, vector<16x256xbf16>
    %cst = arith.constant dense<0.000000e+00> : vector<8x256xf32>
    %5 = tpu.matmul %1, %4, %cst {dimension_numbers = #tpu.dot_dimension_numbers<[1], [0], [0], [1], [0, 0, 1, 1], [], []>} : vector<8x16xbf16>, vector<16x256xbf16>, vector<8x256xf32> -> vector<8x256xf32>
    %c0_5 = arith.constant 0 : index
    %c0_6 = arith.constant 0 : index
    %6 = vector.load %arg4[%c0_5, %c0_6] : memref<4x256xbf16, #tpu.memory_space<vmem>>, vector<4x256xbf16>
    %cst_7 = arith.constant dense<0.000000e+00> : vector<8x256xf32>
    %7 = tpu.matmul %3, %6, %cst_7 {dimension_numbers = #tpu.dot_dimension_numbers<[1], [0], [0], [1], [0, 0, 1, 1], [], []>} : vector<8x4xbf16>, vector<4x256xbf16>, vector<8x256xf32> -> vector<8x256xf32>
    %8 = arith.addf %5, %7 : vector<8x256xf32>
    %c0_8 = arith.constant 0 : index
    %c0_9 = arith.constant 0 : index
    %9 = vector.load %arg5[%c0_8, %c0_9] : memref<1x256xf32, #tpu.memory_space<vmem>>, vector<1x256xf32>
    %10 = vector.broadcast %9 : vector<1x256xf32> to vector<8x256xf32>
    %11 = arith.addf %8, %10 : vector<8x256xf32>
    %cst_10 = arith.constant 0.000000e+00 : f32
    %12 = vector.broadcast %cst_10 : f32 to vector<8x256xf32>
    %13 = arith.maximumf %11, %12 : vector<8x256xf32>
    %14 = arith.truncf %13 : vector<8x256xf32> to vector<8x256xbf16>
    %c0_11 = arith.constant 0 : index
    %c0_12 = arith.constant 0 : index
    %15 = vector.load %arg6[%c0_11, %c0_12] : memref<256x256xbf16, #tpu.memory_space<vmem>>, vector<256x256xbf16>
    %cst_13 = arith.constant dense<0.000000e+00> : vector<8x256xf32>
    %16 = tpu.matmul %14, %15, %cst_13 {dimension_numbers = #tpu.dot_dimension_numbers<[1], [0], [0], [1], [0, 0, 1, 1], [], []>} : vector<8x256xbf16>, vector<256x256xbf16>, vector<8x256xf32> -> vector<8x256xf32>
    %c0_14 = arith.constant 0 : index
    %c0_15 = arith.constant 0 : index
    %17 = vector.load %arg7[%c0_14, %c0_15] : memref<1x256xf32, #tpu.memory_space<vmem>>, vector<1x256xf32>
    %18 = vector.broadcast %17 : vector<1x256xf32> to vector<8x256xf32>
    %19 = arith.addf %16, %18 : vector<8x256xf32>
    %cst_16 = arith.constant 0.000000e+00 : f32
    %20 = vector.broadcast %cst_16 : f32 to vector<8x256xf32>
    %21 = arith.maximumf %19, %20 : vector<8x256xf32>
    %c0_17 = arith.constant 0 : index
    %c0_18 = arith.constant 0 : index
    %22 = vector.load %arg8[%c0_17, %c0_18] : memref<1x256xf32, #tpu.memory_space<vmem>>, vector<1x256xf32>
    %23 = vector.broadcast %22 : vector<1x256xf32> to vector<8x256xf32>
    %24 = arith.mulf %21, %23 : vector<8x256xf32>
    %cst_19 = arith.constant dense<0.000000e+00> : vector<8xf32>
    %25 = vector.multi_reduction <add>, %24, %cst_19 [1] : vector<8x256xf32> to vector<8xf32>
    %26 = vector.shape_cast %25 : vector<8xf32> to vector<8x1xf32>
    %c0_20 = arith.constant 0 : index
    %c0_21 = arith.constant 0 : index
    %27 = vector.load %arg9[%c0_20, %c0_21] : memref<1x1xf32, #tpu.memory_space<vmem>>, vector<1x1xf32>
    %28 = vector.broadcast %27 : vector<1x1xf32> to vector<8x1xf32>
    %29 = arith.addf %26, %28 : vector<8x1xf32>
    %c0_22 = arith.constant 0 : index
    %c0_23 = arith.constant 0 : index
    %30 = vector.load %arg10[%c0_22, %c0_23] : memref<8x1xf32, #tpu.memory_space<vmem>>, vector<8x1xf32>
    tpu.vector_store %arg10[%c0_22, %c0_23], %29 {strides = array<i32>} : memref<8x1xf32, #tpu.memory_space<vmem>>, vector<8x1xf32>,
    return
  }
  func.func @transform_0(%arg0: i32) -> (i32, i32) {
    %c0_i32 = arith.constant 0 : i32
    %c0_i32_0 = arith.constant 0 : i32
    return %arg0, %c0_i32 : i32, i32
  }
  func.func @transform_1(%arg0: i32) -> (i32, i32) {
    %c0_i32 = arith.constant 0 : i32
    %c0_i32_0 = arith.constant 0 : i32
    return %arg0, %c0_i32 : i32, i32
  }
  func.func @transform_2(%arg0: i32) -> (i32, i32) {
    %c0_i32 = arith.constant 0 : i32
    %c0_i32_0 = arith.constant 0 : i32
    %c0_i32_1 = arith.constant 0 : i32
    return %c0_i32, %c0_i32_0 : i32, i32
  }
  func.func @transform_3(%arg0: i32) -> (i32, i32) {
    %c0_i32 = arith.constant 0 : i32
    %c0_i32_0 = arith.constant 0 : i32
    %c0_i32_1 = arith.constant 0 : i32
    return %c0_i32, %c0_i32_0 : i32, i32
  }
  func.func @transform_4(%arg0: i32) -> (i32, i32) {
    %c0_i32 = arith.constant 0 : i32
    %c0_i32_0 = arith.constant 0 : i32
    %c0_i32_1 = arith.constant 0 : i32
    return %c0_i32, %c0_i32_0 : i32, i32
  }
  func.func @transform_5(%arg0: i32) -> (i32, i32) {
    %c0_i32 = arith.constant 0 : i32
    %c0_i32_0 = arith.constant 0 : i32
    %c0_i32_1 = arith.constant 0 : i32
    return %c0_i32, %c0_i32_0 : i32, i32
  }
  func.func @transform_6(%arg0: i32) -> (i32, i32) {
    %c0_i32 = arith.constant 0 : i32
    %c0_i32_0 = arith.constant 0 : i32
    %c0_i32_1 = arith.constant 0 : i32
    return %c0_i32, %c0_i32_0 : i32, i32
  }
  func.func @transform_7(%arg0: i32) -> (i32, i32) {
    %c0_i32 = arith.constant 0 : i32
    %c0_i32_0 = arith.constant 0 : i32
    %c0_i32_1 = arith.constant 0 : i32
    return %c0_i32, %c0_i32_0 : i32, i32
  }
  func.func @transform_8(%arg0: i32) -> (i32, i32) {
    %c0_i32 = arith.constant 0 : i32
    %c0_i32_0 = arith.constant 0 : i32
    %c0_i32_1 = arith.constant 0 : i32
    return %c0_i32, %c0_i32_0 : i32, i32
  }
  func.func @transform_9(%arg0: i32) -> (i32, i32) {
    %c0_i32 = arith.constant 0 : i32
    %c0_i32_0 = arith.constant 0 : i32
    return %arg0, %c0_i32 : i32, i32
  }
}

</mosaic_0001>

<llo_original>
// kernel: critic_forward.1
$region0: #{critic_forward.1}
  #allocation0 [shape = 'u32[]', space=smem, size = 0x4, offset = 0x4, fixed_abs, tag = 'smem constant byte address 0x4 - core index']
  #allocation1 [shape = 'u32[144,128]{1,0:T(1,128)}', space=vmem, size = 0x12000, scoped, tag = 'internal scratch']
  #allocation2 [shape = 'f32[1,1]{1,0:T(1,128)S(1)}', space=vmem, size = 0x200, scoped, tag = 'scoped memory for critic_forward.1']
  %s0 = inlined_call_operand.vmem [shape: f32[8,16], index: 0, kind: input, shape index: {}]
  %s1 = inlined_call_operand.vmem [shape: f32[8,4], index: 1, kind: input, shape index: {}]
  %s2 = inlined_call_operand.vmem [shape: bf16[16,256], index: 2, kind: input, shape index: {}]
  %s3 = inlined_call_operand.vmem [shape: bf16[4,256], index: 3, kind: input, shape index: {}]
  %s4 = inlined_call_operand.vmem [shape: f32[1,256], index: 4, kind: input, shape index: {}]
  %s5 = inlined_call_operand.vmem [shape: bf16[256,256], index: 5, kind: input, shape index: {}]
  %s6 = inlined_call_operand.vmem [shape: f32[1,256], index: 6, kind: input, shape index: {}]
  %s7 = inlined_call_operand.vmem [shape: f32[1,256], index: 7, kind: input, shape index: {}]
  %s8 = inlined_call_operand.<no memory space> [shape: f32[1,1], index: 8, kind: input, shape index: {}]
  %s9 = inlined_call_operand.vmem [shape: f32[8,1], index: 9, kind: output, shape index: {}]
  %s10 = sld [smem:[#allocation0]]
  $region46: #{critic_forward.1} parent=0
    _
  %s12 = ssub.s32 1, %s10
  %s13 = scalar_select 0, %s12, %s10
  %v14 = vstv %s8
  %15 = vst [vmem:[#allocation2] sm:$0x1] %v14
  // Predicated region
  $region2: #{critic_forward.1} parent=0 // pred_check
    _
  $region3: #{critic_forward.1} parent=0 // pred_check_branch
    %17 = sbr.rel (0) target = $region5
  $region4: #{critic_forward.1} parent=0 // pred_region
    _
  $region5: #{critic_forward.1} parent=0 // pred_fallthru
    _
  // Predicated region
  $region6: #{critic_forward.1} parent=0 // pred_check
    _
  $region7: #{critic_forward.1} parent=0 // pred_check_branch
    %19 = sbr.rel (0) target = $region9
  $region8: #{critic_forward.1} parent=0 // pred_region
    _
  $region9: #{critic_forward.1} parent=0 // pred_fallthru
    _
  // Predicated region
  $region10: #{critic_forward.1} parent=0 // pred_check
    _
  $region11: #{critic_forward.1} parent=0 // pred_check_branch
    %21 = sbr.rel (0) target = $region13
  $region12: #{critic_forward.1} parent=0 // pred_region
    _
  $region13: #{critic_forward.1} parent=0 // pred_fallthru
    _
  // Predicated region
  $region14: #{critic_forward.1} parent=0 // pred_check
    _
  $region15: #{critic_forward.1} parent=0 // pred_check_branch
    %23 = sbr.rel (0) target = $region17
  $region16: #{critic_forward.1} parent=0 // pred_region
    _
  $region17: #{critic_forward.1} parent=0 // pred_fallthru
    _
  // Predicated region
  $region18: #{critic_forward.1} parent=0 // pred_check
    _
  $region19: #{critic_forward.1} parent=0 // pred_check_branch
    %25 = sbr.rel (0) target = $region21
  $region20: #{critic_forward.1} parent=0 // pred_region
    _
  $region21: #{critic_forward.1} parent=0 // pred_fallthru
    _
  // Predicated region
  $region22: #{critic_forward.1} parent=0 // pred_check
    _
  $region23: #{critic_forward.1} parent=0 // pred_check_branch
    %27 = sbr.rel (0) target = $region25
  $region24: #{critic_forward.1} parent=0 // pred_region
    _
  $region25: #{critic_forward.1} parent=0 // pred_fallthru
    _
  // Predicated region
  $region26: #{critic_forward.1} parent=0 // pred_check
    _
  $region27: #{critic_forward.1} parent=0 // pred_check_branch
    %29 = sbr.rel (0) target = $region29
  $region28: #{critic_forward.1} parent=0 // pred_region
    _
  $region29: #{critic_forward.1} parent=0 // pred_fallthru
    _
  // Predicated region
  $region30: #{critic_forward.1} parent=0 // pred_check
    _
  $region31: #{critic_forward.1} parent=0 // pred_check_branch
    %31 = sbr.rel (0) target = $region33
  $region32: #{critic_forward.1} parent=0 // pred_region
    _
  $region33: #{critic_forward.1} parent=0 // pred_fallthru
    _
  // Predicated region
  $region34: #{critic_forward.1} parent=0 // pred_check
    _
  $region35: #{critic_forward.1} parent=0 // pred_check_branch
    %33 = sbr.rel (0) target = $region37
  $region36: #{critic_forward.1} parent=0 // pred_region
    _
  $region37: #{critic_forward.1} parent=0 // pred_fallthru
    _
  %v35 = vld [vmem:[%s0] sm:$0xff]
  %v36 = vpack.c.bf16 %v35, %v35
  %v37 = vld [vmem:[%s1] sm:$0xff]
  %v38 = vpack.c.bf16 %v37, %v37
  %v39 = vld [vmem:[%s2] sm:$0xff]
  %v40 = vld [vmem:[%s2 + $0x8] sm:$0xff]
  %v41 = vld [vmem:[%s3] sm:$0xf]
  %v44 = vunpack.c.l.s4 1983009808
  %v45 = vunpack.c.0.s8 %v44
  %v46 = vlaneseq
  %v47 = vshrl.u32 %v46, 7
  %v48 = vsub.s32 %v45, %v47
  %v49 = vrot.slane %v41, %v48
  %v50 = vcombine.high %v49, %v49
  %vm51 = vcmask 31744
  %v53 = vsel %vm51, %v38, 0
  %vm55 = vcmask 1041408
  %v57 = vsel %vm55, %v49, 0
  %v60 = vsel %vm55, %v50, 0
  %62 = vmatprep.subr.bf16.mxu0 0
  %63 = vmatpush1.bf16.msra.mxu0 0
  %64 = vmatprep.subr.bf16.mxu0 0
  %65 = vmatpush1.bf16.msra.mxu0 0
  %66 = vmatprep.subr.bf16.mxu0 0
  %67 = vmatpush1.bf16.msra.mxu0 0
  %68 = vmatprep.subr.bf16.mxu0 0
  %69 = vmatpush1.bf16.msra.mxu0 0
  %70 = vmatprep.subr.bf16.mxu0 0
  %71 = vmatpush1.bf16.msra.mxu0 0
  %72 = vmatprep.subr.bf16.mxu0 0
  %73 = vmatpush1.bf16.msra.mxu0 0
  %74 = vmatprep.subr.bf16.mxu0 0
  %75 = vmatpush1.bf16.msra.mxu0 0
  %76 = vmatprep.subr.bf16.mxu0 %v60
  %77 = vmatpush1.bf16.msra.mxu0 %v57
  %78 = vmatprep.subr.bf16.mxu0 0
  %79 = vmatpush2.bf16.msra.mxu0 0
  %80 = vmatprep.subr.bf16.mxu0 0
  %81 = vmatpush2.bf16.msra.mxu0 0
  %82 = vmatprep.subr.bf16.mxu0 0
  %83 = vmatpush2.bf16.msra.mxu0 0
  %84 = vmatprep.subr.bf16.mxu0 0
  %85 = vmatpush2.bf16.msra.mxu0 0
  %86 = vmatprep.subr.bf16.mxu0 0
  %87 = vmatpush2.bf16.msra.mxu0 0
  %88 = vmatprep.subr.bf16.mxu0 0
  %89 = vmatpush2.bf16.msra.mxu0 0
  %90 = vmatprep.subr.bf16.mxu0 0
  %91 = vmatpush2.bf16.msra.mxu0 0
  %92 = vmatprep.subr.bf16.mxu0 0
  %93 = vmatpush2.bf16.msra.mxu0 0
  %94 = vmatprep.mubr.bf16.mxu0 0
  %95 = vmatmul.mubr.bf16.gmra.mxu0 %v53
  %v96 = vpop.f32.mrf.mxu0
  %v97 = vadd.f32 0.0, %v96
  %v98 = vpop.f32.mrf.mxu0
  %v99 = vadd.f32 0.0, %v98
  %v100 = vpop.f32.mrf.mxu0
  %v101 = vpop.f32.mrf.mxu0
  %102 = vdwg.mxu0
  %v105 = vunpack.c.l.b16 %v39
  %v106 = vunpack.c.h.b16 %v39
  %v107 = vunpack.c.l.b16 %v40
  %v108 = vunpack.c.h.b16 %v40
  %v109 = vpack.c.b16 %v107, %v105
  %v110 = vpack.c.b16 %v108, %v106
  %vm113 = vcmask 130048
  %v115 = vsel %vm113, %v36, 0
  %117 = vmatprep.subr.bf16.mxu0 0
  %118 = vmatpush1.bf16.msra.mxu0 0
  %119 = vmatprep.subr.bf16.mxu0 0
  %120 = vmatpush1.bf16.msra.mxu0 0
  %121 = vmatprep.subr.bf16.mxu0 0
  %122 = vmatpush1.bf16.msra.mxu0 0
  %123 = vmatprep.subr.bf16.mxu0 0
  %124 = vmatpush1.bf16.msra.mxu0 0
  %125 = vmatprep.subr.bf16.mxu0 0
  %126 = vmatpush1.bf16.msra.mxu0 0
  %127 = vmatprep.subr.bf16.mxu0 0
  %128 = vmatpush1.bf16.msra.mxu0 0
  %129 = vmatprep.subr.bf16.mxu0 0
  %130 = vmatpush1.bf16.msra.mxu0 0
  %131 = vmatprep.subr.bf16.mxu0 %v110
  %132 = vmatpush1.bf16.msra.mxu0 %v109
  %133 = vmatprep.subr.bf16.mxu0 0
  %134 = vmatpush2.bf16.msra.mxu0 0
  %135 = vmatprep.subr.bf16.mxu0 0
  %136 = vmatpush2.bf16.msra.mxu0 0
  %137 = vmatprep.subr.bf16.mxu0 0
  %138 = vmatpush2.bf16.msra.mxu0 0
  %139 = vmatprep.subr.bf16.mxu0 0
  %140 = vmatpush2.bf16.msra.mxu0 0
  %141 = vmatprep.subr.bf16.mxu0 0
  %142 = vmatpush2.bf16.msra.mxu0 0
  %143 = vmatprep.subr.bf16.mxu0 0
  %144 = vmatpush2.bf16.msra.mxu0 0
  %145 = vmatprep.subr.bf16.mxu0 0
  %146 = vmatpush2.bf16.msra.mxu0 0
  %147 = vmatprep.subr.bf16.mxu0 0
  %148 = vmatpush2.bf16.msra.mxu0 0
  %149 = vmatprep.mubr.bf16.mxu0 0
  %150 = vmatmul.mubr.bf16.gmra.mxu0 %v115
  %v151 = vpop.f32.mrf.mxu0
  %v152 = vadd.f32 %v97, %v151
  %v153 = vpop.f32.mrf.mxu0
  %v154 = vadd.f32 %v99, %v153
  %v155 = vpop.f32.mrf.mxu0
  %v156 = vpop.f32.mrf.mxu0
  %157 = vdwg.mxu0
  %v158 = vld [vmem:[%s4] sm:$0x3]
  %v160 = vlaneseq
  %v161 = vshrl.u32 %v160, 7
  %v162 = vsub.s32 0, %v161
  %v163 = vrot.slane %v158, %v162
  %v164 = vlaneseq
  %v165 = vshrl.u32 %v164, 7
  %v166 = vsub.s32 1, %v165
  %v167 = vrot.slane %v158, %v166
  %v170 = vadd.f32 %v152, %v163
  %v171 = vadd.f32 %v154, %v167
  %v172 = vmax.f32 %v170, 0.0
  %v173 = vmax.f32 %v171, 0.0
  %v174 = vpack.c.bf16 %v172, %v172
  %v175 = vpack.c.bf16 %v173, %v173
  %v176 = vld [vmem:[%s5] sm:$0xff]
  %v177 = vld [vmem:[%s5 + $0x8] sm:$0xff]
  %v178 = vld [vmem:[%s5 + $0x10] sm:$0xff]
  %v179 = vld [vmem:[%s5 + $0x18] sm:$0xff]
  %v180 = vld [vmem:[%s5 + $0x20] sm:$0xff]
  %v181 = vld [vmem:[%s5 + $0x28] sm:$0xff]
  %v182 = vld [vmem:[%s5 + $0x30] sm:$0xff]
  %v183 = vld [vmem:[%s5 + $0x38] sm:$0xff]
  %v184 = vld [vmem:[%s5 + $0x40] sm:$0xff]
  %v185 = vld [vmem:[%s5 + $0x48] sm:$0xff]
  %v186 = vld [vmem:[%s5 + $0x50] sm:$0xff]
  %v187 = vld [vmem:[%s5 + $0x58] sm:$0xff]
  %v188 = vld [vmem:[%s5 + $0x60] sm:$0xff]
  %v189 = vld [vmem:[%s5 + $0x68] sm:$0xff]
  %v190 = vld [vmem:[%s5 + $0x70] sm:$0xff]
  %v191 = vld [vmem:[%s5 + $0x78] sm:$0xff]
  %v192 = vld [vmem:[%s5 + $0x80] sm:$0xff]
  %v193 = vld [vmem:[%s5 + $0x88] sm:$0xff]
  %v194 = vld [vmem:[%s5 + $0x90] sm:$0xff]
  %v195 = vld [vmem:[%s5 + $0x98] sm:$0xff]
  %v196 = vld [vmem:[%s5 + $0xa0] sm:$0xff]
  %v197 = vld [vmem:[%s5 + $0xa8] sm:$0xff]
  %v198 = vld [vmem:[%s5 + $0xb0] sm:$0xff]
  %v199 = vld [vmem:[%s5 + $0xb8] sm:$0xff]
  %v200 = vld [vmem:[%s5 + $0xc0] sm:$0xff]
  %v201 = vld [vmem:[%s5 + $0xc8] sm:$0xff]
  %v202 = vld [vmem:[%s5 + $0xd0] sm:$0xff]
  %v203 = vld [vmem:[%s5 + $0xd8] sm:$0xff]
  %v204 = vld [vmem:[%s5 + $0xe0] sm:$0xff]
  %v205 = vld [vmem:[%s5 + $0xe8] sm:$0xff]
  %v206 = vld [vmem:[%s5 + $0xf0] sm:$0xff]
  %v207 = vld [vmem:[%s5 + $0xf8] sm:$0xff]
  %v208 = vld [vmem:[%s6] sm:$0x3]
  %v210 = vlaneseq
  %v211 = vshrl.u32 %v210, 7
  %v212 = vsub.s32 0, %v211
  %v213 = vrot.slane %v208, %v212
  %v214 = vlaneseq
  %v215 = vshrl.u32 %v214, 7
  %v216 = vsub.s32 1, %v215
  %v217 = vrot.slane %v208, %v216
  %v252 = vunpack.c.l.b16 %v176
  %v253 = vunpack.c.h.b16 %v176
  %v254 = vunpack.c.l.b16 %v177
  %v255 = vunpack.c.h.b16 %v177
  %v256 = vunpack.c.l.b16 %v178
  %v257 = vunpack.c.h.b16 %v178
  %v258 = vunpack.c.l.b16 %v179
  %v259 = vunpack.c.h.b16 %v179
  %v260 = vunpack.c.l.b16 %v180
  %v261 = vunpack.c.h.b16 %v180
  %v262 = vunpack.c.l.b16 %v181
  %v263 = vunpack.c.h.b16 %v181
  %v264 = vunpack.c.l.b16 %v182
  %v265 = vunpack.c.h.b16 %v182
  %v266 = vunpack.c.l.b16 %v183
  %v267 = vunpack.c.h.b16 %v183
  %v268 = vunpack.c.l.b16 %v184
  %v269 = vunpack.c.h.b16 %v184
  %v270 = vunpack.c.l.b16 %v185
  %v271 = vunpack.c.h.b16 %v185
  %v272 = vunpack.c.l.b16 %v186
  %v273 = vunpack.c.h.b16 %v186
  %v274 = vunpack.c.l.b16 %v187
  %v275 = vunpack.c.h.b16 %v187
  %v276 = vunpack.c.l.b16 %v188
  %v277 = vunpack.c.h.b16 %v188
  %v278 = vunpack.c.l.b16 %v189
  %v279 = vunpack.c.h.b16 %v189
  %v280 = vunpack.c.l.b16 %v190
  %v281 = vunpack.c.h.b16 %v190
  %v282 = vunpack.c.l.b16 %v191
  %v283 = vunpack.c.h.b16 %v191
  %v284 = vunpack.c.l.b16 %v192
  %v285 = vunpack.c.h.b16 %v192
  %v286 = vunpack.c.l.b16 %v193
  %v287 = vunpack.c.h.b16 %v193
  %v288 = vunpack.c.l.b16 %v194
  %v289 = vunpack.c.h.b16 %v194
  %v290 = vunpack.c.l.b16 %v195
  %v291 = vunpack.c.h.b16 %v195
  %v292 = vunpack.c.l.b16 %v196
  %v293 = vunpack.c.h.b16 %v196
  %v294 = vunpack.c.l.b16 %v197
  %v295 = vunpack.c.h.b16 %v197
  %v296 = vunpack.c.l.b16 %v198
  %v297 = vunpack.c.h.b16 %v198
  %v298 = vunpack.c.l.b16 %v199
  %v299 = vunpack.c.h.b16 %v199
  %v300 = vunpack.c.l.b16 %v200
  %v301 = vunpack.c.h.b16 %v200
  %v302 = vunpack.c.l.b16 %v201
  %v303 = vunpack.c.h.b16 %v201
  %v304 = vunpack.c.l.b16 %v202
  %v305 = vunpack.c.h.b16 %v202
  %v306 = vunpack.c.l.b16 %v203
  %v307 = vunpack.c.h.b16 %v203
  %v308 = vunpack.c.l.b16 %v204
  %v309 = vunpack.c.h.b16 %v204
  %v310 = vunpack.c.l.b16 %v205
  %v311 = vunpack.c.h.b16 %v205
  %v312 = vunpack.c.l.b16 %v206
  %v313 = vunpack.c.h.b16 %v206
  %v314 = vunpack.c.l.b16 %v207
  %v315 = vunpack.c.h.b16 %v207
  %v316 = vpack.c.b16 %v254, %v252
  %v317 = vpack.c.b16 %v255, %v253
  %v318 = vpack.c.b16 %v258, %v256
  %v319 = vpack.c.b16 %v259, %v257
  %v320 = vpack.c.b16 %v262, %v260
  %v321 = vpack.c.b16 %v263, %v261
  %v322 = vpack.c.b16 %v266, %v264
  %v323 = vpack.c.b16 %v267, %v265
  %v324 = vpack.c.b16 %v270, %v268
  %v325 = vpack.c.b16 %v271, %v269
  %v326 = vpack.c.b16 %v274, %v272
  %v327 = vpack.c.b16 %v275, %v273
  %v328 = vpack.c.b16 %v278, %v276
  %v329 = vpack.c.b16 %v279, %v277
  %v330 = vpack.c.b16 %v282, %v280
  %v331 = vpack.c.b16 %v283, %v281
  %v332 = vpack.c.b16 %v286, %v284
  %v333 = vpack.c.b16 %v287, %v285
  %v334 = vpack.c.b16 %v290, %v288
  %v335 = vpack.c.b16 %v291, %v289
  %v336 = vpack.c.b16 %v294, %v292
  %v337 = vpack.c.b16 %v295, %v293
  %v338 = vpack.c.b16 %v298, %v296
  %v339 = vpack.c.b16 %v299, %v297
  %v340 = vpack.c.b16 %v302, %v300
  %v341 = vpack.c.b16 %v303, %v301
  %v342 = vpack.c.b16 %v306, %v304
  %v343 = vpack.c.b16 %v307, %v305
  %v344 = vpack.c.b16 %v310, %v308
  %v345 = vpack.c.b16 %v311, %v309
  %v346 = vpack.c.b16 %v314, %v312
  %v347 = vpack.c.b16 %v315, %v313
  %380 = vmatprep.subr.bf16.mxu0 %v331
  %381 = vmatpush1.bf16.msra.mxu0 %v330
  %382 = vmatprep.subr.bf16.mxu0 %v329
  %383 = vmatpush1.bf16.msra.mxu0 %v328
  %384 = vmatprep.subr.bf16.mxu0 %v327
  %385 = vmatpush1.bf16.msra.mxu0 %v326
  %386 = vmatprep.subr.bf16.mxu0 %v325
  %387 = vmatpush1.bf16.msra.mxu0 %v324
  %388 = vmatprep.subr.bf16.mxu0 %v323
  %389 = vmatpush1.bf16.msra.mxu0 %v322
  %390 = vmatprep.subr.bf16.mxu0 %v321
  %391 = vmatpush1.bf16.msra.mxu0 %v320
  %392 = vmatprep.subr.bf16.mxu0 %v319
  %393 = vmatpush1.bf16.msra.mxu0 %v318
  %394 = vmatprep.subr.bf16.mxu0 %v317
  %395 = vmatpush1.bf16.msra.mxu0 %v316
  %396 = vmatprep.subr.bf16.mxu0 %v347
  %397 = vmatpush2.bf16.msra.mxu0 %v346
  %398 = vmatprep.subr.bf16.mxu0 %v345
  %399 = vmatpush2.bf16.msra.mxu0 %v344
  %400 = vmatprep.subr.bf16.mxu0 %v343
  %401 = vmatpush2.bf16.msra.mxu0 %v342
  %402 = vmatprep.subr.bf16.mxu0 %v341
  %403 = vmatpush2.bf16.msra.mxu0 %v340
  %404 = vmatprep.subr.bf16.mxu0 %v339
  %405 = vmatpush2.bf16.msra.mxu0 %v338
  %406 = vmatprep.subr.bf16.mxu0 %v337
  %407 = vmatpush2.bf16.msra.mxu0 %v336
  %408 = vmatprep.subr.bf16.mxu0 %v335
  %409 = vmatpush2.bf16.msra.mxu0 %v334
  %410 = vmatprep.subr.bf16.mxu0 %v333
  %411 = vmatpush2.bf16.msra.mxu0 %v332
  %412 = vmatprep.mubr.bf16.mxu0 %v175
  %413 = vmatmul.mubr.bf16.gmra.mxu0 %v174
  %v414 = vpop.f32.mrf.mxu0
  %v415 = vadd.f32 %v213, %v414
  %v416 = vpop.f32.mrf.mxu0
  %v417 = vadd.f32 %v217, %v416
  %v418 = vpop.f32.mrf.mxu0
  %v419 = vpop.f32.mrf.mxu0
  %420 = vdwg.mxu0
  %v421 = vmax.f32 %v415, 0.0
  %v422 = vmax.f32 %v417, 0.0
  %v423 = vld [vmem:[%s7] sm:$0x3]
  %v425 = vlaneseq
  %v426 = vshrl.u32 %v425, 7
  %v427 = vsub.s32 0, %v426
  %v428 = vrot.slane %v423, %v427
  %v429 = vlaneseq
  %v430 = vshrl.u32 %v429, 7
  %v431 = vsub.s32 1, %v430
  %v432 = vrot.slane %v423, %v431
  %v435 = vmul.f32 %v421, %v428
  %v436 = vmul.f32 %v422, %v432
  %v437 = vadd.f32 %v435, %v436
  %438 = vadd.xlane.f32.xlu0 %v437
  %v439 = vpop.xlane.xlu0 %438
  %v440 = vld [vmem:[#allocation2] sm:$0x1]
  %v442 = vlaneseq
  %v443 = vshrl.u32 %v442, 7
  %v444 = vsub.s32 0, %v443
  %v445 = vrot.slane %v440, %v444
  %v447 = vadd.f32 %v439, %v445
  %vm448 = vcmask 7168
  %449 = vst.msk [vmem:[%s9] sm:$0xff] %vm448, %v447
  // Predicated region
  $region38: #{critic_forward.1} parent=0 // pred_check
    _
  $region39: #{critic_forward.1} parent=0 // pred_check_branch
    %451 = sbr.rel (0) target = $region41
  $region40: #{critic_forward.1} parent=0 // pred_region
    _
  $region41: #{critic_forward.1} parent=0 // pred_fallthru
    _
  // Predicated region
  $region42: #{critic_forward.1} parent=0 // pred_check
    _
  $region43: #{critic_forward.1} parent=0 // pred_check_branch
    %453 = sbr.rel (0) target = $region45
  $region44: #{critic_forward.1} parent=0 // pred_region
    _
  $region45: #{critic_forward.1} parent=0 // pred_fallthru
    _

</llo_original>
